<compile_context>
chip_gen: v5e
topology: v5e:2x2
jax: 0.10.0
libtpu: 0.0.40
codegen_flags: <defaults>
</compile_context>

<pallas_src>
import functools
import math

import jax
import jax.numpy as jnp
from jax import lax
from jax.experimental import pallas as pl
from jax.experimental.pallas import tpu as pltpu


def _round_up(x, m):
    return (x + m - 1) // m * m


def _embed_kernel(ids_ref, table_ref, o_ref, *, scale, vocab, tile_tokens, group):
    """Gather `tile_tokens` rows in sublane-dense groups and scale by sqrt(d_model)."""
    base = pl.program_id(0) * tile_tokens
    # Scale constant in the output dtype: exact for f32 tables; for bf16 tables
    # this keeps the multiply native bf16 (bf16 VPU on v6e/v7x; Mosaic
    # legalizes it on v5e).
    scale_c = jnp.asarray(scale, dtype=o_ref.dtype)

    def body(g, carry):
        g0 = base + g * group
        rows = []
        for t in range(group):                     # static unroll over the group
            tok = ids_ref[g0 + t]                  # scalar id from SMEM
            tok = jnp.minimum(jnp.maximum(tok, 0), vocab - 1)   # clamp bad ids
            rows.append(table_ref[pl.ds(tok, 1), :])            # (1, d_model)
        block = jnp.concatenate(rows, axis=0)      # (group, d_model) dense value
        start = pl.multiple_of(g * group, group)   # sublane-aligned store offset
        o_ref[pl.ds(start, group), :] = block * scale_c   # one unmasked store
        return carry

    lax.fori_loop(0, tile_tokens // group, body, 0)


def embeddings_pallas(ids, table, *, tile_tokens=None):
    """ids: int array, any shape; table: (vocab, d_model).

    Returns lut(ids) * sqrt(d_model), shape ids.shape + (d_model,).
    """
    vocab, d_model = table.shape
    scale = math.sqrt(d_model)
    itemsize = table.dtype.itemsize
    group = 16 if itemsize == 2 else 8             # one full vreg worth of rows

    flat = ids.reshape(-1).astype(jnp.int32)
    n = flat.shape[0]

    # Tile sizing: ~4 MiB of output per block (double-buffered), never below
    # one group; shrink to the group-rounded token count for small inputs.
    if tile_tokens is None:
        tile_tokens = (4 * 1024 * 1024) // max(1, d_model * itemsize)
    tile_tokens = max(group, min(_round_up(tile_tokens, group), _round_up(n, group)))

    n_pad = _round_up(n, tile_tokens)
    if n_pad != n:
        flat = jnp.pad(flat, (0, n_pad - n))       # pad ids (cheap); sliced below
    grid = n_pad // tile_tokens

    table_bytes = vocab * d_model * itemsize
    out_block_bytes = tile_tokens * d_model * itemsize

    # Per-generation VMEM budget (v5e/v6e: 128 MiB, v7x: 64 MiB per core).
    try:
        vmem_cap = int(pltpu.get_tpu_info().vmem_capacity_bytes)
    except Exception:
        vmem_cap = 64 * 1024 * 1024                # conservative (v7x per-core)
    vmem_budget = (vmem_cap * 3) // 4              # ~25% headroom for compiler scratch

    # Single-buffered resident table + double-buffered output block + slack.
    need = table_bytes + 2 * out_block_bytes + 2 * 1024 * 1024
    if need > vmem_budget:
        # TODO(synk): HBM DMA-gather fallback for tables above the resident cutoff.
        raise NotImplementedError(
            "embedding table too large for the VMEM-resident path on this TPU")
    vmem_limit = int(min(vmem_budget, max(16 * 1024 * 1024, need + 2 * 1024 * 1024)))

    kernel = functools.partial(_embed_kernel, scale=scale, vocab=vocab,
                               tile_tokens=tile_tokens, group=group)
    out = pl.pallas_call(
        kernel,
        out_shape=jax.ShapeDtypeStruct((n_pad, d_model), table.dtype),
        grid_spec=pltpu.PrefetchScalarGridSpec(
            num_scalar_prefetch=1,                 # flat token ids -> SMEM
            grid=(grid,),
            in_specs=[
                # Whole embedding table resident in VMEM, single copy
                # (no double-buffer; it never changes across the grid).
                # Note: on v7x with a "parallel" grid axis each TensorCore
                # gets its own copy -- the per-core budget above accounts
                # for one full table.
                pl.BlockSpec(memory_space=pltpu.MemorySpace.VMEM),
            ],
            out_specs=pl.BlockSpec((tile_tokens, d_model), lambda i, ids: (i, 0)),
        ),
        compiler_params=pltpu.CompilerParams(
            # Megacore split of the token-tile axis (only pays when each core
            # still gets large tiles; harmless for grid=1).
            dimension_semantics=("parallel",),
            vmem_limit_bytes=vmem_limit,
        ),
    )(flat, table)

    if n_pad != n:
        out = out[:n]
    return out.reshape(*ids.shape, d_model)


if __name__ == "__main__":
    key = jax.random.PRNGKey(0)
    B, T = 2, 64            # batch, sequence length
    d_model = 128           # lane-dense feature dim (multiple of 128)
    vocab = 512

    k1, k2 = jax.random.split(key)
    ids = jax.random.randint(k1, (B, T), 0, vocab, dtype=jnp.int32)
    # nn.Embedding default init is N(0, 1); deterministic small-scale init here.
    table = 0.02 * jax.random.normal(k2, (vocab, d_model), dtype=jnp.float32)

    # Default tiling: 128 tokens -> one full tile, no padding, no output slice.
    out = embeddings_pallas(ids, table)
    out = jax.block_until_ready(out)

    # Pure-JAX reference: lut(x) * sqrt(d_model)
    ref = jnp.take(table, ids.reshape(-1), axis=0).reshape(B, T, d_model) \
        * math.sqrt(d_model)
    assert out.shape == (B, T, d_model)
    assert jnp.max(jnp.abs(out - ref)) < 1e-5, "mismatch vs reference"

    print("KERNEL_OK")
</pallas_src>

<mosaic_0001>
module attributes {stable_mosaic.version = 11 : i64} {
  func.func @_embed_kernel(%arg0: i32, %arg1: memref<128xi32, #tpu.memory_space<smem>>, %arg2: memref<512x128xf32, #tpu.memory_space<vmem>>, %arg3: memref<128x128xf32, #tpu.memory_space<vmem>>) attributes {dimension_semantics = [#tpu.dimension_semantics<parallel>], iteration_bounds = array<i64: 1>, scalar_prefetch = 1 : i64, scratch_operands = 0 : i64, tpu.core_type = #tpu.core_type<tc>, window_params = [{pipeline_mode = #tpu.pipeline_mode<synchronous>, transform_indices = @transform_0, window_bounds = array<i64: 512, 128>}, {transform_indices = @transform_1, window_bounds = array<i64: 128, 128>}]} {
    %c128_i32 = arith.constant 128 : i32
    %0 = arith.muli %arg0, %c128_i32 : i32
    %cst = arith.constant 11.3137083 : f32
    %c0_i32 = arith.constant 0 : i32
    %c16_i32 = arith.constant 16 : i32
    %1 = arith.addi %c0_i32, %c16_i32 : i32
    %c1_i32 = arith.constant 1 : i32
    scf.for %arg4 = %c0_i32 to %1 step %c1_i32  : i32 {
      %c8_i32 = arith.constant 8 : i32
      %2 = arith.muli %arg4, %c8_i32 : i32
      %3 = arith.addi %0, %2 : i32
      %c0_i32_1 = arith.constant 0 : i32
      %4 = arith.addi %3, %c0_i32_1 : i32
      %5 = arith.index_cast %4 : i32 to index
      %6 = memref.load %arg1[%5] : memref<128xi32, #tpu.memory_space<smem>>
      %c0_i32_2 = arith.constant 0 : i32
      %7 = arith.maxsi %6, %c0_i32_2 : i32
      %c511_i32 = arith.constant 511 : i32
      %8 = arith.minsi %7, %c511_i32 : i32
      %9 = arith.index_cast %8 : i32 to index
      %c0 = arith.constant 0 : index
      %10 = vector.load %arg2[%9, %c0] : memref<512x128xf32, #tpu.memory_space<vmem>>, vector<1x128xf32>
      %c1_i32_3 = arith.constant 1 : i32
      %11 = arith.addi %3, %c1_i32_3 : i32
      %12 = arith.index_cast %11 : i32 to index
      %13 = memref.load %arg1[%12] : memref<128xi32, #tpu.memory_space<smem>>
      %c0_i32_4 = arith.constant 0 : i32
      %14 = arith.maxsi %13, %c0_i32_4 : i32
      %c511_i32_5 = arith.constant 511 : i32
      %15 = arith.minsi %14, %c511_i32_5 : i32
      %16 = arith.index_cast %15 : i32 to index
      %c0_6 = arith.constant 0 : index
      %17 = vector.load %arg2[%16, %c0_6] : memref<512x128xf32, #tpu.memory_space<vmem>>, vector<1x128xf32>
      %c2_i32 = arith.constant 2 : i32
      %18 = arith.addi %3, %c2_i32 : i32
      %19 = arith.index_cast %18 : i32 to index
      %20 = memref.load %arg1[%19] : memref<128xi32, #tpu.memory_space<smem>>
      %c0_i32_7 = arith.constant 0 : i32
      %21 = arith.maxsi %20, %c0_i32_7 : i32
      %c511_i32_8 = arith.constant 511 : i32
      %22 = arith.minsi %21, %c511_i32_8 : i32
      %23 = arith.index_cast %22 : i32 to index
      %c0_9 = arith.constant 0 : index
      %24 = vector.load %arg2[%23, %c0_9] : memref<512x128xf32, #tpu.memory_space<vmem>>, vector<1x128xf32>
      %c3_i32 = arith.constant 3 : i32
      %25 = arith.addi %3, %c3_i32 : i32
      %26 = arith.index_cast %25 : i32 to index
      %27 = memref.load %arg1[%26] : memref<128xi32, #tpu.memory_space<smem>>
      %c0_i32_10 = arith.constant 0 : i32
      %28 = arith.maxsi %27, %c0_i32_10 : i32
      %c511_i32_11 = arith.constant 511 : i32
      %29 = arith.minsi %28, %c511_i32_11 : i32
      %30 = arith.index_cast %29 : i32 to index
      %c0_12 = arith.constant 0 : index
      %31 = vector.load %arg2[%30, %c0_12] : memref<512x128xf32, #tpu.memory_space<vmem>>, vector<1x128xf32>
      %c4_i32 = arith.constant 4 : i32
      %32 = arith.addi %3, %c4_i32 : i32
      %33 = arith.index_cast %32 : i32 to index
      %34 = memref.load %arg1[%33] : memref<128xi32, #tpu.memory_space<smem>>
      %c0_i32_13 = arith.constant 0 : i32
      %35 = arith.maxsi %34, %c0_i32_13 : i32
      %c511_i32_14 = arith.constant 511 : i32
      %36 = arith.minsi %35, %c511_i32_14 : i32
      %37 = arith.index_cast %36 : i32 to index
      %c0_15 = arith.constant 0 : index
      %38 = vector.load %arg2[%37, %c0_15] : memref<512x128xf32, #tpu.memory_space<vmem>>, vector<1x128xf32>
      %c5_i32 = arith.constant 5 : i32
      %39 = arith.addi %3, %c5_i32 : i32
      %40 = arith.index_cast %39 : i32 to index
      %41 = memref.load %arg1[%40] : memref<128xi32, #tpu.memory_space<smem>>
      %c0_i32_16 = arith.constant 0 : i32
      %42 = arith.maxsi %41, %c0_i32_16 : i32
      %c511_i32_17 = arith.constant 511 : i32
      %43 = arith.minsi %42, %c511_i32_17 : i32
      %44 = arith.index_cast %43 : i32 to index
      %c0_18 = arith.constant 0 : index
      %45 = vector.load %arg2[%44, %c0_18] : memref<512x128xf32, #tpu.memory_space<vmem>>, vector<1x128xf32>
      %c6_i32 = arith.constant 6 : i32
      %46 = arith.addi %3, %c6_i32 : i32
      %47 = arith.index_cast %46 : i32 to index
      %48 = memref.load %arg1[%47] : memref<128xi32, #tpu.memory_space<smem>>
      %c0_i32_19 = arith.constant 0 : i32
      %49 = arith.maxsi %48, %c0_i32_19 : i32
      %c511_i32_20 = arith.constant 511 : i32
      %50 = arith.minsi %49, %c511_i32_20 : i32
      %51 = arith.index_cast %50 : i32 to index
      %c0_21 = arith.constant 0 : index
      %52 = vector.load %arg2[%51, %c0_21] : memref<512x128xf32, #tpu.memory_space<vmem>>, vector<1x128xf32>
      %c7_i32 = arith.constant 7 : i32
      %53 = arith.addi %3, %c7_i32 : i32
      %54 = arith.index_cast %53 : i32 to index
      %55 = memref.load %arg1[%54] : memref<128xi32, #tpu.memory_space<smem>>
      %c0_i32_22 = arith.constant 0 : i32
      %56 = arith.maxsi %55, %c0_i32_22 : i32
      %c511_i32_23 = arith.constant 511 : i32
      %57 = arith.minsi %56, %c511_i32_23 : i32
      %58 = arith.index_cast %57 : i32 to index
      %c0_24 = arith.constant 0 : index
      %59 = vector.load %arg2[%58, %c0_24] : memref<512x128xf32, #tpu.memory_space<vmem>>, vector<1x128xf32>
      %60 = tpu.concatenate %10, %17, %24, %31, %38, %45, %52, %59 in 0 : vector<1x128xf32>, vector<1x128xf32>, vector<1x128xf32>, vector<1x128xf32>, vector<1x128xf32>, vector<1x128xf32>, vector<1x128xf32>, vector<1x128xf32> -> vector<8x128xf32>
      %c8_i32_25 = arith.constant 8 : i32
      %61 = arith.muli %arg4, %c8_i32_25 : i32
      %62 = tpu.assume_multiple %61, 8 : i32
      %63 = vector.broadcast %cst : f32 to vector<8x128xf32>
      %64 = arith.mulf %60, %63 : vector<8x128xf32>
      %65 = arith.index_cast %62 : i32 to index
      %c0_26 = arith.constant 0 : index
      %66 = vector.load %arg3[%65, %c0_26] : memref<128x128xf32, #tpu.memory_space<vmem>>, vector<8x128xf32>
      tpu.vector_store %arg3[%65, %c0_26], %64 {strides = array<i32>} : memref<128x128xf32, #tpu.memory_space<vmem>>, vector<8x128xf32>,
    }
    %c16_i32_0 = arith.constant 16 : i32
    return
  }
  func.func @transform_0(%arg0: i32, %arg1: memref<128xi32, #tpu.memory_space<smem>>) -> (i32, i32) {
    %c0_i32 = arith.constant 0 : i32
    %c0_i32_0 = arith.constant 0 : i32
    %c0_i32_1 = arith.constant 0 : i32
    return %c0_i32, %c0_i32_0 : i32, i32
  }
  func.func @transform_1(%arg0: i32, %arg1: memref<128xi32, #tpu.memory_space<smem>>) -> (i32, i32) {
    %c0_i32 = arith.constant 0 : i32
    %c0_i32_0 = arith.constant 0 : i32
    return %arg0, %c0_i32 : i32, i32
  }
}

</mosaic_0001>

<llo_original>
// kernel: tpu_custom_call.1
$region0: #{tpu_custom_call.1}
  #allocation0 [shape = 'u32[]', space=smem, size = 0x4, offset = 0x4, fixed_abs, tag = 'smem constant byte address 0x4 - core index']
  #allocation1 [shape = 'u32[72,128]{1,0:T(1,128)}', space=vmem, size = 0x9000, scoped, tag = 'internal scratch']
  #allocation2 [shape = 's32[1]{0}', space=sflag, size = 0x4, scoped, tag = 'scoped memory for tpu_custom_call.1']
  #allocation3 [shape = 'u8[512]{0}', space=smem, size = 0x200, scoped, tag = 'prefetched SMEM operand 0']
  %s0 = inlined_call_operand.hbm [shape: s32[128], index: 0, kind: input, shape index: {}]
  %s1 = inlined_call_operand.hbm [shape: f32[512,128], index: 1, kind: input, shape index: {}]
  %s2 = inlined_call_operand.hbm [shape: f32[128,128], index: 2, kind: output, shape index: {}]
  %s3 = sld [smem:[#allocation0]]
  $region25: #{tpu_custom_call.1} parent=0
    _
  %s5 = ssub.s32 1, %s3
  %s6 = scalar_select 0, %s5, %s3
  %s8 = sshll.u32 %s0, 4
  %s9 = int_to_ptr.hbm [resolvable:$true] %s8
  %11 = dma.hbm_to_smem %s9, 16, [#allocation3], [#allocation2]
  %13 = dma.done [#allocation2], 16
  %14 = sfence
  $region1: #{tpu_custom_call.1} parent=0
    #allocation4 [shape = 'u8[262144]{0}', space=vmem, size = 0x40000, scoped, tag = 'input window, operand 1, single buffered']
    #allocation5 [shape = 's32[1]{0}', space=sflag, size = 0x4, scoped, tag = 'scoped memory for tpu_custom_call.1']
    #allocation6 [shape = 's32[1]{0}', space=sflag, size = 0x4, scoped, tag = 'scoped memory for tpu_custom_call.1']
    #allocation7 [shape = 'u8[65536]{0}', space=vmem, size = 0x10000, scoped, tag = 'output window, operand 0, single buffered']
    %15 = vsyncpa [#allocation5], 0
    %16 = vsyncpa [#allocation6], 0
    // Predicated region
    $region2: #{tpu_custom_call.1} parent=1 // pred_check
      _
    $region3: #{tpu_custom_call.1} parent=1 // pred_check_branch
      %18 = sbr.rel (0) target = $region5
    $region4: #{tpu_custom_call.1} parent=1 // pred_region
      %20 = vsyncadd [#allocation5], 0
      %s21 = sshll.u32 %s1, 4
      %s22 = int_to_ptr.hbm [resolvable:$true] %s21
      %s23 = sshll.u32 [#allocation4], 4
      %s24 = int_to_ptr.vmem [resolvable:$true] %s23
      %29 = dma.hbm_to_vmem [thread:$0]  %s22, 8192, %s24, [#allocation5], 128, 128, 8
    $region5: #{tpu_custom_call.1} parent=1 // pred_fallthru
      _
    // Predicated region
    $region6: #{tpu_custom_call.1} parent=1 // pred_check
      _
    $region7: #{tpu_custom_call.1} parent=1 // pred_check_branch
      %31 = sbr.rel (0) target = $region9
    $region8: #{tpu_custom_call.1} parent=1 // pred_region
      %33 = dma.done [#allocation5], 8192
    $region9: #{tpu_custom_call.1} parent=1 // pred_fallthru
      _
    %s34 = smul.u32 0, 128
    loop: start=0, step=1, limit=16
    $region10: #{tpu_custom_call.1} parent=1 // loop_pre_header
      _
    $region11: #{tpu_custom_call.1} parent=1 // loop_header
      %s36 = sphi 0, %s40
      %p37 = scmp.ge.s32.totalorder %s36, 16
    $region12: #{tpu_custom_call.1} parent=1 // loop_header_branch
      %39 = sbr.rel (%p37) target = $region16
    $region13: #{tpu_custom_call.1} parent=1 // loop_body
      %s41 = smul.u32 %s36, 8
      %s42 = sadd.s32 %s34, %s41
      %s43 = sld [smem:[#allocation3 + %s42]]
      %p44 = scmp.gt.s32.totalorder %s43, 0
      %s45 = scalar_select %p44, %s43, 0
      %p46 = scmp.lt.s32.totalorder %s45, 511
      %s47 = scalar_select %p46, %s45, 511
      %s48 = scalar_lea.vmem [#allocation4], %s47
      %v49 = vld [vmem:[%s48] sm:$0x1]
      %s50 = sadd.s32 %s42, 1
      %s51 = sld [smem:[#allocation3 + %s50]]
      %p52 = scmp.gt.s32.totalorder %s51, 0
      %s53 = scalar_select %p52, %s51, 0
      %p54 = scmp.lt.s32.totalorder %s53, 511
      %s55 = scalar_select %p54, %s53, 511
      %s56 = scalar_lea.vmem [#allocation4], %s55
      %v57 = vld [vmem:[%s56] sm:$0x1]
      %s58 = sadd.s32 %s42, 2
      %s59 = sld [smem:[#allocation3 + %s58]]
      %p60 = scmp.gt.s32.totalorder %s59, 0
      %s61 = scalar_select %p60, %s59, 0
      %p62 = scmp.lt.s32.totalorder %s61, 511
      %s63 = scalar_select %p62, %s61, 511
      %s64 = scalar_lea.vmem [#allocation4], %s63
      %v65 = vld [vmem:[%s64] sm:$0x1]
      %s66 = sadd.s32 %s42, 3
      %s67 = sld [smem:[#allocation3 + %s66]]
      %p68 = scmp.gt.s32.totalorder %s67, 0
      %s69 = scalar_select %p68, %s67, 0
      %p70 = scmp.lt.s32.totalorder %s69, 511
      %s71 = scalar_select %p70, %s69, 511
      %s72 = scalar_lea.vmem [#allocation4], %s71
      %v73 = vld [vmem:[%s72] sm:$0x1]
      %s74 = sadd.s32 %s42, 4
      %s75 = sld [smem:[#allocation3 + %s74]]
      %p76 = scmp.gt.s32.totalorder %s75, 0
      %s77 = scalar_select %p76, %s75, 0
      %p78 = scmp.lt.s32.totalorder %s77, 511
      %s79 = scalar_select %p78, %s77, 511
      %s80 = scalar_lea.vmem [#allocation4], %s79
      %v81 = vld [vmem:[%s80] sm:$0x1]
      %s82 = sadd.s32 %s42, 5
      %s83 = sld [smem:[#allocation3 + %s82]]
      %p84 = scmp.gt.s32.totalorder %s83, 0
      %s85 = scalar_select %p84, %s83, 0
      %p86 = scmp.lt.s32.totalorder %s85, 511
      %s87 = scalar_select %p86, %s85, 511
      %s88 = scalar_lea.vmem [#allocation4], %s87
      %v89 = vld [vmem:[%s88] sm:$0x1]
      %s90 = sadd.s32 %s42, 6
      %s91 = sld [smem:[#allocation3 + %s90]]
      %p92 = scmp.gt.s32.totalorder %s91, 0
      %s93 = scalar_select %p92, %s91, 0
      %p94 = scmp.lt.s32.totalorder %s93, 511
      %s95 = scalar_select %p94, %s93, 511
      %s96 = scalar_lea.vmem [#allocation4], %s95
      %v97 = vld [vmem:[%s96] sm:$0x1]
      %s98 = sadd.s32 %s42, 7
      %s99 = sld [smem:[#allocation3 + %s98]]
      %p100 = scmp.gt.s32.totalorder %s99, 0
      %s101 = scalar_select %p100, %s99, 0
      %p102 = scmp.lt.s32.totalorder %s101, 511
      %s103 = scalar_select %p102, %s101, 511
      %s104 = scalar_lea.vmem [#allocation4], %s103
      %v105 = vld [vmem:[%s104] sm:$0x1]
      %v107 = vrot.slane %v57, 7
      %v110 = vrot.slane %v65, 6
      %v113 = vrot.slane %v73, 5
      %v116 = vrot.slane %v81, 4
      %v119 = vrot.slane %v89, 3
      %v122 = vrot.slane %v97, 2
      %v125 = vrot.slane %v105, 1
      %vm127 = vcmask 1040384
      %v128 = vsel %vm127, %v49, %v107
      %vm129 = vcmask 1041408
      %v130 = vsel %vm129, %v128, %v110
      %vm131 = vcmask 1042432
      %v132 = vsel %vm131, %v130, %v113
      %vm133 = vcmask 1043456
      %v134 = vsel %vm133, %v132, %v116
      %vm135 = vcmask 1044480
      %v136 = vsel %vm135, %v134, %v119
      %vm137 = vcmask 1045504
      %v138 = vsel %vm137, %v136, %v122
      %vm139 = vcmask 1046528
      %v140 = vsel %vm139, %v138, %v125
      %v141 = vmul.f32 %v140, 11.313708
      %s142 = scalar_lea.vmem [#allocation7], %s41
      %143 = vst [vmem:[%s142] sm:$0xff] %v141
    $region14: #{tpu_custom_call.1} parent=1 // loop_footer
      %s40 = sadd.s32 1, %s36
    $region15: #{tpu_custom_call.1} parent=1 // loop_footer_branch
      %35 = sbr.rel target = $region11
    $region16: #{tpu_custom_call.1} parent=1 // loop_exit
      _
    // Predicated region
    $region17: #{tpu_custom_call.1} parent=1 // pred_check
      _
    $region18: #{tpu_custom_call.1} parent=1 // pred_check_branch
      %145 = sbr.rel (0) target = $region20
    $region19: #{tpu_custom_call.1} parent=1 // pred_region
      %147 = vsyncadd [#allocation6], 0
      %s148 = sshll.u32 [#allocation7], 4
      %s149 = int_to_ptr.vmem [resolvable:$true] %s148
      %s150 = sshll.u32 %s2, 4
      %s151 = int_to_ptr.hbm [resolvable:$true] %s150
      %156 = dma.vmem_to_hbm [thread:$0]  %s149, 2048, %s151, [#allocation6], 128, 128, 8
    $region20: #{tpu_custom_call.1} parent=1 // pred_fallthru
      _
    // Predicated region
    $region21: #{tpu_custom_call.1} parent=1 // pred_check
      _
    $region22: #{tpu_custom_call.1} parent=1 // pred_check_branch
      %158 = sbr.rel (0) target = $region24
    $region23: #{tpu_custom_call.1} parent=1 // pred_region
      %160 = dma.done [#allocation6], 2048
    $region24: #{tpu_custom_call.1} parent=1 // pred_fallthru
      _
    %161 = vsyncpa [#allocation5], 1
    %162 = vsyncpa [#allocation6], 1

</llo_original>
